<compile_context>
chip_gen: v5e
topology: v5e:2x2
jax: 0.10.0
libtpu: 0.0.40
codegen_flags: <defaults>
</compile_context>

<pallas_src>
import functools
import math

import jax
import jax.numpy as jnp
from jax import lax
from jax.experimental import pallas as pl
from jax.experimental.pallas import tpu as pltpu


_VMEM_LIMIT = 32 * 1024 * 1024   # explicit scoped-VMEM budget, safe on v5e/v6e/v7x


# ----------------------------------------------------------------------------
# helpers
# ----------------------------------------------------------------------------
def _fit_tile(dim, target, align):
    """Largest tile <= target that divides `dim` and is a multiple of `align`;
    falls back to the full dim (a full-extent block is always legal)."""
    if dim <= target:
        return dim
    best = None
    t = align
    while t <= target:
        if dim % t == 0:
            best = t
        t += align
    return best if best is not None else dim


def _heads_per_block(num_heads, head_dim):
    """Smallest head count per grid step whose lane width is a multiple of 128;
    fall back to all heads (block width == H == full array dim, always legal)."""
    for hpb in range(1, num_heads + 1):
        if num_heads % hpb == 0 and (hpb * head_dim) % 128 == 0:
            return hpb
    return num_heads


# ----------------------------------------------------------------------------
# Kernel 1: stacked, tiled projection   y[g] = x @ w[g] + b[g]
#   x: (N, K) bf16   w: (G, K, Ho) bf16   b: (G, 1, Ho) f32   ->   y: (G, N, Ho) bf16
# ----------------------------------------------------------------------------
def _proj_kernel(x_ref, w_ref, b_ref, o_ref, acc_ref):
    @pl.when(pl.program_id(2) == 0)
    def _init():
        acc_ref[...] = jnp.zeros_like(acc_ref)

    acc_ref[...] += jnp.dot(x_ref[...], w_ref[0],
                            preferred_element_type=jnp.float32)

    @pl.when(pl.program_id(2) == pl.num_programs(2) - 1)
    def _finalize():
        o_ref[0] = (acc_ref[...] + b_ref[0].astype(jnp.float32)).astype(o_ref.dtype)


def pallas_proj(x, w, b, *, tm_target=512, tk_target=512):
    """x: (N, K) bf16; w: (G, K, Ho) bf16; b: (G, Ho) f32 -> (G, N, Ho) bf16."""
    N, K = x.shape
    G, _, Ho = w.shape
    tm = _fit_tile(N, tm_target, 8)
    tk = _fit_tile(K, tk_target, 128)
    grid = (N // tm, G, K // tk)

    return pl.pallas_call(
        _proj_kernel,
        out_shape=jax.ShapeDtypeStruct((G, N, Ho), jnp.bfloat16),
        grid_spec=pltpu.PrefetchScalarGridSpec(
            num_scalar_prefetch=0,
            grid=grid,
            in_specs=[
                pl.BlockSpec((tm, tk), lambda i, g, k: (i, k)),
                pl.BlockSpec((1, tk, Ho), lambda i, g, k: (g, k, 0)),
                pl.BlockSpec((1, 1, Ho), lambda i, g, k: (g, 0, 0)),
            ],
            out_specs=pl.BlockSpec((1, tm, Ho), lambda i, g, k: (g, i, 0)),
            scratch_shapes=[pltpu.VMEM((tm, Ho), jnp.float32)],
        ),
        compiler_params=pltpu.CompilerParams(
            dimension_semantics=("parallel", "parallel", "arbitrary"),
            vmem_limit_bytes=_VMEM_LIMIT),
    )(x, w, b.reshape(G, 1, Ho))


# ----------------------------------------------------------------------------
# Kernel 2: multi-head scaled-dot-product attention
#   q:  (Gq, B, Sq, H) bf16 (scale folded into weights), group q_group
#   kv: (Gkv, B, Sk, H) bf16, groups k_group / v_group
#   mask: (B, Sq, Sk) bf16 additive (optional)
#   output: (B, Sq, H) -- head columns selected purely via BlockSpec index_maps
# ----------------------------------------------------------------------------
def _mha_kernel(q_ref, k_ref, v_ref, *rest, hpb, d, has_mask):
    if has_mask:
        m_ref, o_ref = rest
        mask = m_ref[0].astype(jnp.float32)              # (tq, Sk)
    else:
        (o_ref,) = rest
        mask = None

    qb = q_ref[0, 0]                                     # (tq, bw)  bf16, pre-scaled
    kb = k_ref[0, 0]                                     # (Sk, bw)
    vb = v_ref[0, 0]                                     # (Sk, bw)

    outs = []
    for h in range(hpb):                                 # static unroll over heads
        cols = slice(h * d, (h + 1) * d)
        # QK^T: contract last axes directly (no .T relayout of K)
        s = lax.dot_general(qb[:, cols], kb[:, cols], (((1,), (1,)), ((), ())),
                            preferred_element_type=jnp.float32)   # (tq, Sk)
        if mask is not None:
            s = s + mask
        s = s - jnp.max(s, axis=-1, keepdims=True)
        p = jnp.exp(s)
        o_h = jnp.dot(p.astype(jnp.bfloat16), vb[:, cols],
                      preferred_element_type=jnp.float32)          # (tq, d)
        # deferred normalization: scale the (tq,d) result, not the (tq,Sk) probs
        o_h = o_h * pl.reciprocal(jnp.sum(p, axis=-1, keepdims=True), approx=True)
        outs.append(o_h)

    o_ref[0] = jnp.concatenate(outs, axis=-1).astype(o_ref.dtype)


def pallas_mha(q, kv, mask, num_heads, head_dim, out_dtype, *,
               q_group=0, k_group=0, v_group=1, tq_target=256):
    _, B, Sq, H = q.shape
    Sk = kv.shape[2]
    hpb = _heads_per_block(num_heads, head_dim)
    n_hblk = num_heads // hpb
    bw = hpb * head_dim
    tq = _fit_tile(Sq, tq_target, 8)
    n_qblk = Sq // tq
    has_mask = mask is not None

    kern = functools.partial(_mha_kernel, hpb=hpb, d=head_dim, has_mask=has_mask)

    in_specs = [
        pl.BlockSpec((1, 1, tq, bw), lambda b, h, qi: (q_group, b, qi, h)),
        # K/V index_maps ignore the q axis -> their DMAs are reused across q tiles
        pl.BlockSpec((1, 1, Sk, bw), lambda b, h, qi: (k_group, b, 0, h)),
        pl.BlockSpec((1, 1, Sk, bw), lambda b, h, qi: (v_group, b, 0, h)),
    ]
    args = [q, kv, kv]
    if has_mask:
        # per-(batch, q-tile) bf16 mask, shared by every head step
        in_specs.append(pl.BlockSpec((1, tq, Sk), lambda b, h, qi: (b, qi, 0)))
        args.append(mask)

    return pl.pallas_call(
        kern,
        out_shape=jax.ShapeDtypeStruct((B, Sq, H), out_dtype),
        grid_spec=pltpu.PrefetchScalarGridSpec(
            num_scalar_prefetch=0,
            grid=(B, n_hblk, n_qblk),
            in_specs=in_specs,
            out_specs=pl.BlockSpec((1, tq, bw), lambda b, h, qi: (b, qi, h)),
        ),
        compiler_params=pltpu.CompilerParams(
            dimension_semantics=("parallel", "parallel", "parallel"),
            vmem_limit_bytes=_VMEM_LIMIT),
    )(*args)


# ----------------------------------------------------------------------------
# Module wrapper
# ----------------------------------------------------------------------------
class BertSelfAttentionPallas:
    def __init__(self, hidden_size, num_attention_heads, key):
        if hidden_size % num_attention_heads != 0:
            raise ValueError("hidden size not a multiple of heads")
        self.H = hidden_size
        self.nh = num_attention_heads
        self.d = hidden_size // num_attention_heads

        keys = jax.random.split(key, 6)
        bound = 1.0 / math.sqrt(hidden_size)  # nn.Linear default init range

        def lin(kw, kb):
            w = jax.random.uniform(kw, (hidden_size, hidden_size),
                                   jnp.float32, -bound, bound)
            b = jax.random.uniform(kb, (hidden_size,), jnp.float32, -bound, bound)
            return w, b

        wq, bq = lin(keys[0], keys[1])
        wk, bk = lin(keys[2], keys[3])
        wv, bv = lin(keys[4], keys[5])

        # f32 originals kept only for the pure-JAX reference check.
        self.wq_f32, self.bq_f32 = wq, bq
        self.wk_f32, self.bk_f32 = wk, bk
        self.wv_f32, self.bv_f32 = wv, bv

        # 1/sqrt(d) folded into the Q projection; bf16 weights, f32 biases.
        scale = 1.0 / math.sqrt(self.d)
        self.w_qkv = jnp.stack([wq * scale, wk, wv], axis=0).astype(jnp.bfloat16)  # (3,H,H)
        self.b_qkv = jnp.stack([bq * scale, bk, bv], axis=0)                       # (3,H) f32
        self.w_q, self.b_q = self.w_qkv[:1], self.b_qkv[:1]
        self.w_kv, self.b_kv = self.w_qkv[1:], self.b_qkv[1:]

    def __call__(self, hidden_states, context, attention_mask=None):
        B, Sq, H = hidden_states.shape
        Sk = context.shape[1]
        out_dtype = hidden_states.dtype

        x_q = hidden_states.reshape(B * Sq, H).astype(jnp.bfloat16)

        if context is hidden_states:
            # true self-attention: fused (3,H,H) projection, input read once
            qkv = pallas_proj(x_q, self.w_qkv, self.b_qkv).reshape(3, B, Sq, H)
            q, kv = qkv, qkv
            k_group, v_group = 1, 2
        else:
            x_kv = context.reshape(B * Sk, H).astype(jnp.bfloat16)
            q = pallas_proj(x_q, self.w_q, self.b_q).reshape(1, B, Sq, H)
            kv = pallas_proj(x_kv, self.w_kv, self.b_kv).reshape(2, B, Sk, H)
            k_group, v_group = 0, 1

        mask = None
        if attention_mask is not None:
            # accept (B,1,Sq,Sk), (B,1,1,Sk) or (B,Sq,Sk) additive masks; bf16
            m = attention_mask.astype(jnp.bfloat16)
            if m.ndim == 4:
                m = m[:, 0]
            mask = jnp.broadcast_to(m, (B, Sq, Sk))
            # TODO(synk): accept a (B,Sk) key-padding row and broadcast in-kernel
            # to avoid materializing (B,Sq,Sk) at long sequence lengths.

        # TODO(synk): attention-probability dropout not implemented (eval only).
        return pallas_mha(q, kv, mask, self.nh, self.d, out_dtype,
                          q_group=0, k_group=k_group, v_group=v_group)


# ----------------------------------------------------------------------------
# pure-JAX reference (mirrors the PyTorch module) for a correctness check
# ----------------------------------------------------------------------------
def _reference(module, hidden_states, context, attention_mask):
    q = hidden_states @ module.wq_f32 + module.bq_f32
    k = context @ module.wk_f32 + module.bk_f32
    v = context @ module.wv_f32 + module.bv_f32

    B, Sq, H = q.shape
    Sk = k.shape[1]
    nh, d = module.nh, module.d
    qh = q.reshape(B, Sq, nh, d).transpose(0, 2, 1, 3)
    kh = k.reshape(B, Sk, nh, d).transpose(0, 2, 1, 3)
    vh = v.reshape(B, Sk, nh, d).transpose(0, 2, 1, 3)

    s = jnp.einsum("bhqd,bhkd->bhqk", qh, kh) / math.sqrt(d)
    if attention_mask is not None:
        s = s + attention_mask
    p = jax.nn.softmax(s, axis=-1)
    o = jnp.einsum("bhqk,bhkd->bhqd", p, vh)
    return o.transpose(0, 2, 1, 3).reshape(B, Sq, H)


if __name__ == "__main__":
    key = jax.random.PRNGKey(0)
    k_param, k_h, k_c, k_m = jax.random.split(key, 4)

    B, Sq, Sk, H, NH = 2, 8, 8, 32, 4

    module = BertSelfAttentionPallas(hidden_size=H, num_attention_heads=NH,
                                     key=k_param)

    hidden_states = jax.random.normal(k_h, (B, Sq, H), jnp.float32)
    context = jax.random.normal(k_c, (B, Sk, H), jnp.float32)
    # additive mask: 0 for keep, -10000 for masked positions
    mask_bits = jax.random.bernoulli(k_m, 0.9, (B, 1, Sq, Sk))
    attention_mask = jnp.where(mask_bits, 0.0, -10000.0).astype(jnp.float32)

    # cross-attention, (B,1,Sq,Sk) additive mask
    out = module(hidden_states, context, attention_mask)
    jax.block_until_ready(out)
    assert out.shape == (B, Sq, H)
    assert bool(jnp.all(jnp.isfinite(out)))
    ref = _reference(module, hidden_states, context, attention_mask)
    assert float(jnp.max(jnp.abs(out - ref))) < 0.1  # bf16-matmul tolerance

    # cross-attention, HF-style (B,1,1,Sk) key-padding mask (broadcast path)
    pad_bits = jax.random.bernoulli(k_m, 0.8, (B, 1, 1, Sk))
    pad_mask = jnp.where(pad_bits, 0.0, -10000.0).astype(jnp.float32)
    out_p = module(hidden_states, context, pad_mask)
    jax.block_until_ready(out_p)
    ref_p = _reference(module, hidden_states, context, pad_mask)
    assert float(jnp.max(jnp.abs(out_p - ref_p))) < 0.1

    # maskless cross-attention (separate compiled variant, no zero-mask DMA)
    out2 = module(hidden_states, context, None)
    jax.block_until_ready(out2)
    ref2 = _reference(module, hidden_states, context, None)
    assert float(jnp.max(jnp.abs(out2 - ref2))) < 0.1

    # true self-attention: exercises the fused (3,H,H) QKV projection path
    out3 = module(hidden_states, hidden_states, attention_mask)
    jax.block_until_ready(out3)
    ref3 = _reference(module, hidden_states, hidden_states, attention_mask)
    assert float(jnp.max(jnp.abs(out3 - ref3))) < 0.1

    print("KERNEL_OK")
</pallas_src>

<mosaic_0001>
module attributes {stable_mosaic.version = 11 : i64} {
  func.func @_proj_kernel(%arg0: i32, %arg1: i32, %arg2: i32, %arg3: memref<16x32xbf16, #tpu.memory_space<vmem>>, %arg4: memref<1x32x32xbf16, #tpu.memory_space<vmem>>, %arg5: memref<1x1x32xf32, #tpu.memory_space<vmem>>, %arg6: memref<1x16x32xbf16, #tpu.memory_space<vmem>>, %arg7: memref<16x32xf32, #tpu.memory_space<vmem>>) attributes {dimension_semantics = [#tpu.dimension_semantics<parallel>, #tpu.dimension_semantics<parallel>, #tpu.dimension_semantics<arbitrary>], iteration_bounds = array<i64: 1, 1, 1>, scalar_prefetch = 0 : i64, scratch_operands = 1 : i64, tpu.core_type = #tpu.core_type<tc>, window_params = [{transform_indices = @transform_0, window_bounds = array<i64: 16, 32>}, {transform_indices = @transform_1, window_bounds = array<i64: 1, 32, 32>}, {transform_indices = @transform_2, window_bounds = array<i64: 1, 1, 32>}, {transform_indices = @transform_3, window_bounds = array<i64: 1, 16, 32>}]} {
    %c0_i32 = arith.constant 0 : i32
    %0 = arith.cmpi eq, %arg2, %c0_i32 : i32
    %1 = arith.extui %0 : i1 to i32
    %c0_i32_0 = arith.constant 0 : i32
    %2 = arith.cmpi ne, %1, %c0_i32_0 : i32
    scf.if %2 {
      %cst_11 = arith.constant 0.000000e+00 : f32
      %13 = vector.broadcast %cst_11 : f32 to vector<16x32xf32>
      %c0_12 = arith.constant 0 : index
      %c0_13 = arith.constant 0 : index
      %14 = vector.load %arg7[%c0_12, %c0_13] : memref<16x32xf32, #tpu.memory_space<vmem>>, vector<16x32xf32>
      tpu.vector_store %arg7[%c0_12, %c0_13], %13 {strides = array<i32>} : memref<16x32xf32, #tpu.memory_space<vmem>>, vector<16x32xf32>,
    } else {
    }
    %c0 = arith.constant 0 : index
    %c0_1 = arith.constant 0 : index
    %3 = vector.load %arg7[%c0, %c0_1] : memref<16x32xf32, #tpu.memory_space<vmem>>, vector<16x32xf32>
    %c0_2 = arith.constant 0 : index
    %c0_3 = arith.constant 0 : index
    %4 = vector.load %arg3[%c0_2, %c0_3] : memref<16x32xbf16, #tpu.memory_space<vmem>>, vector<16x32xbf16>
    %c0_4 = arith.constant 0 : index
    %c0_5 = arith.constant 0 : index
    %c0_6 = arith.constant 0 : index
    %5 = vector.load %arg4[%c0_4, %c0_5, %c0_6] : memref<1x32x32xbf16, #tpu.memory_space<vmem>>, vector<1x32x32xbf16>
    %6 = vector.shape_cast %5 : vector<1x32x32xbf16> to vector<32x32xbf16>
    %cst = arith.constant dense<0.000000e+00> : vector<16x32xf32>
    %7 = tpu.matmul %4, %6, %cst {dimension_numbers = #tpu.dot_dimension_numbers<[1], [0], [0], [1], [0, 0, 1, 1], [], []>} : vector<16x32xbf16>, vector<32x32xbf16>, vector<16x32xf32> -> vector<16x32xf32>
    %8 = arith.addf %3, %7 : vector<16x32xf32>
    %c0_7 = arith.constant 0 : index
    %c0_8 = arith.constant 0 : index
    %9 = vector.load %arg7[%c0_7, %c0_8] : memref<16x32xf32, #tpu.memory_space<vmem>>, vector<16x32xf32>
    tpu.vector_store %arg7[%c0_7, %c0_8], %8 {strides = array<i32>} : memref<16x32xf32, #tpu.memory_space<vmem>>, vector<16x32xf32>,
    %c0_i32_9 = arith.constant 0 : i32
    %10 = arith.cmpi eq, %arg2, %c0_i32_9 : i32
    %11 = arith.extui %10 : i1 to i32
    %c0_i32_10 = arith.constant 0 : i32
    %12 = arith.cmpi ne, %11, %c0_i32_10 : i32
    scf.if %12 {
      %c0_11 = arith.constant 0 : index
      %c0_12 = arith.constant 0 : index
      %13 = vector.load %arg7[%c0_11, %c0_12] : memref<16x32xf32, #tpu.memory_space<vmem>>, vector<16x32xf32>
      %c0_13 = arith.constant 0 : index
      %c0_14 = arith.constant 0 : index
      %c0_15 = arith.constant 0 : index
      %14 = vector.load %arg5[%c0_13, %c0_14, %c0_15] : memref<1x1x32xf32, #tpu.memory_space<vmem>>, vector<1x1x32xf32>
      %15 = vector.shape_cast %14 : vector<1x1x32xf32> to vector<1x32xf32>
      %16 = vector.broadcast %15 : vector<1x32xf32> to vector<16x32xf32>
      %17 = arith.addf %13, %16 : vector<16x32xf32>
      %18 = arith.truncf %17 : vector<16x32xf32> to vector<16x32xbf16>
      %c0_16 = arith.constant 0 : index
      %c0_17 = arith.constant 0 : index
      %c0_18 = arith.constant 0 : index
      %19 = vector.load %arg6[%c0_16, %c0_17, %c0_18] : memref<1x16x32xbf16, #tpu.memory_space<vmem>>, vector<1x16x32xbf16>
      %20 = vector.shape_cast %19 : vector<1x16x32xbf16> to vector<16x32xbf16>
      %21 = vector.shape_cast %18 : vector<16x32xbf16> to vector<1x16x32xbf16>
      tpu.vector_store %arg6[%c0_16, %c0_17, %c0_18], %21 {strides = array<i32>} : memref<1x16x32xbf16, #tpu.memory_space<vmem>>, vector<1x16x32xbf16>,
    } else {
    }
    return
  }
  func.func @transform_0(%arg0: i32, %arg1: i32, %arg2: i32) -> (i32, i32) {
    %c0_i32 = arith.constant 0 : i32
    return %arg0, %arg2 : i32, i32
  }
  func.func @transform_1(%arg0: i32, %arg1: i32, %arg2: i32) -> (i32, i32, i32) {
    %c0_i32 = arith.constant 0 : i32
    %c0_i32_0 = arith.constant 0 : i32
    return %arg1, %arg2, %c0_i32 : i32, i32, i32
  }
  func.func @transform_2(%arg0: i32, %arg1: i32, %arg2: i32) -> (i32, i32, i32) {
    %c0_i32 = arith.constant 0 : i32
    %c0_i32_0 = arith.constant 0 : i32
    %c0_i32_1 = arith.constant 0 : i32
    return %arg1, %c0_i32, %c0_i32_0 : i32, i32, i32
  }
  func.func @transform_3(%arg0: i32, %arg1: i32, %arg2: i32) -> (i32, i32, i32) {
    %c0_i32 = arith.constant 0 : i32
    %c0_i32_0 = arith.constant 0 : i32
    return %arg1, %arg0, %c0_i32 : i32, i32, i32
  }
}

</mosaic_0001>

<llo_original>
// kernel: tpu_custom_call.1
$region0: #{tpu_custom_call.1}
  #allocation0 [shape = 'u32[]', space=smem, size = 0x4, offset = 0x4, fixed_abs, tag = 'smem constant byte address 0x4 - core index']
  #allocation1 [shape = 'u32[72,128]{1,0:T(1,128)}', space=vmem, size = 0x9000, scoped, tag = 'internal scratch']
  #allocation2 [shape = 'f32[16,32]{1,0:T(8,128)}', space=vmem, size = 0x2000, scoped, tag = 'scratch operand']
  %s0 = inlined_call_operand.hbm [shape: bf16[16,32], index: 0, kind: input, shape index: {}]
  %s1 = inlined_call_operand.hbm [shape: bf16[1,32,32], index: 1, kind: input, shape index: {}]
  %s2 = inlined_call_operand.vmem [shape: f32[1,1,32], index: 2, kind: input, shape index: {}]
  %s3 = inlined_call_operand.hbm [shape: bf16[1,16,32], index: 3, kind: output, shape index: {}]
  %s4 = sld [smem:[#allocation0]]
  $region38: #{tpu_custom_call.1} parent=0
    _
  %s6 = ssub.s32 1, %s4
  %s7 = scalar_select 0, %s6, %s4
  $region1: #{tpu_custom_call.1} parent=0
    #allocation3 [shape = 'u8[4096]{0}', space=vmem, size = 0x1000, scoped, tag = 'input window, operand 0, single buffered']
    #allocation4 [shape = 's32[1]{0}', space=sflag, size = 0x4, scoped, tag = 'scoped memory for tpu_custom_call.1']
    #allocation5 [shape = 's32[1]{0}', space=sflag, size = 0x4, scoped, tag = 'scoped memory for tpu_custom_call.1']
    #allocation6 [shape = 'u8[8192]{0}', space=vmem, size = 0x2000, scoped, tag = 'input window, operand 1, single buffered']
    #allocation7 [shape = 's32[1]{0}', space=sflag, size = 0x4, scoped, tag = 'scoped memory for tpu_custom_call.1']
    #allocation8 [shape = 'u8[4096]{0}', space=vmem, size = 0x1000, scoped, tag = 'output window, operand 0, single buffered']
    %8 = vsyncpa [#allocation4], 0
    %9 = vsyncpa [#allocation7], 0
    %10 = vsyncpa [#allocation5], 0
    // Predicated region
    $region2: #{tpu_custom_call.1} parent=1 // pred_check
      _
    $region3: #{tpu_custom_call.1} parent=1 // pred_check_branch
      %12 = sbr.rel (0) target = $region5
    $region4: #{tpu_custom_call.1} parent=1 // pred_region
      %14 = vsyncadd [#allocation4], 0
      %s15 = sshll.u32 %s0, 4
      %s16 = int_to_ptr.hbm [resolvable:$true] %s15
      %s17 = sshll.u32 [#allocation3], 4
      %s18 = int_to_ptr.vmem [resolvable:$true] %s17
      %23 = dma.hbm_to_vmem [thread:$0]  %s16, 128, %s18, [#allocation4], 64, 64, 4
    $region5: #{tpu_custom_call.1} parent=1 // pred_fallthru
      _
    // Predicated region
    $region6: #{tpu_custom_call.1} parent=1 // pred_check
      _
    $region7: #{tpu_custom_call.1} parent=1 // pred_check_branch
      %25 = sbr.rel (0) target = $region9
    $region8: #{tpu_custom_call.1} parent=1 // pred_region
      %27 = vsyncadd [#allocation7], 0
      %s28 = sshll.u32 %s1, 4
      %s29 = int_to_ptr.hbm [resolvable:$true] %s28
      %s30 = sshll.u32 [#allocation6], 4
      %s31 = int_to_ptr.vmem [resolvable:$true] %s30
      %36 = dma.hbm_to_vmem [thread:$0]  %s29, 256, %s31, [#allocation7], 64, 64, 4
    $region9: #{tpu_custom_call.1} parent=1 // pred_fallthru
      _
    // Predicated region
    $region10: #{tpu_custom_call.1} parent=1 // pred_check
      _
    $region11: #{tpu_custom_call.1} parent=1 // pred_check_branch
      %38 = sbr.rel (0) target = $region13
    $region12: #{tpu_custom_call.1} parent=1 // pred_region
      _
    $region13: #{tpu_custom_call.1} parent=1 // pred_fallthru
      _
    // Predicated region
    $region14: #{tpu_custom_call.1} parent=1 // pred_check
      _
    $region15: #{tpu_custom_call.1} parent=1 // pred_check_branch
      %40 = sbr.rel (0) target = $region17
    $region16: #{tpu_custom_call.1} parent=1 // pred_region
      %42 = dma.done [#allocation4], 128
    $region17: #{tpu_custom_call.1} parent=1 // pred_fallthru
      _
    // Predicated region
    $region18: #{tpu_custom_call.1} parent=1 // pred_check
      _
    $region19: #{tpu_custom_call.1} parent=1 // pred_check_branch
      %44 = sbr.rel (0) target = $region21
    $region20: #{tpu_custom_call.1} parent=1 // pred_region
      %46 = dma.done [#allocation7], 256
    $region21: #{tpu_custom_call.1} parent=1 // pred_fallthru
      _
    %p48 = scmp.eq.s32.totalorder 0, 0
    // Predicated region
    $region22: #{tpu_custom_call.1} parent=1 // pred_check
      %p49 = pneg %p48
    $region23: #{tpu_custom_call.1} parent=1 // pred_check_branch
      %51 = sbr.rel (%p49) target = $region25
    $region24: #{tpu_custom_call.1} parent=1 // pred_region
      %vm52 = vcmask 261120
      %53 = vst.msk [vmem:[#allocation2] sm:$0xff] %vm52, 0.0
      %54 = vst.msk [vmem:[#allocation2 + $0x8] sm:$0xff] %vm52, 0.0
    $region25: #{tpu_custom_call.1} parent=1 // pred_fallthru
      _
    %v55 = vld [vmem:[#allocation2] sm:$0xff]
    %v56 = vld [vmem:[#allocation2 + $0x8] sm:$0xff]
    %v57 = vld [vmem:[#allocation3] sm:$0xf]
    %v58 = vld [vmem:[#allocation3 + $0x4] sm:$0xf]
    %v59 = vld [vmem:[#allocation6] sm:$0xf]
    %v60 = vld [vmem:[#allocation6 + $0x4] sm:$0xf]
    %v61 = vld [vmem:[#allocation6 + $0x8] sm:$0xf]
    %v62 = vld [vmem:[#allocation6 + $0xc] sm:$0xf]
    %v65 = vunpack.c.l.b16 %v57
    %v66 = vunpack.c.l.b16 %v58
    %v67 = vpack.c.b16 %v66, %v65
    %v72 = vunpack.c.l.b16 %v59
    %v73 = vunpack.c.l.b16 %v60
    %v74 = vunpack.c.l.b16 %v61
    %v75 = vunpack.c.l.b16 %v62
    %v76 = vpack.c.b16 %v73, %v72
    %v77 = vpack.c.b16 %v75, %v74
    %vm80 = vcmask 261120
    %v82 = vsel %vm80, %v67, 0
    %84 = vmatpush.bf16.msra.mxu0 0
    %85 = vmatpush.bf16.msra.mxu0 0
    %86 = vmatpush.bf16.msra.mxu0 0
    %87 = vmatpush.bf16.msra.mxu0 0
    %88 = vmatpush.bf16.msra.mxu0 0
    %89 = vmatpush.bf16.msra.mxu0 0
    %90 = vmatpush.bf16.msra.mxu0 %v77
    %91 = vmatpush.bf16.msra.mxu0 %v76
    %92 = vmatmul.bf16.gmra.mxu0 %v82
    %v93 = vpop.f32.mrf.mxu0
    %v94 = vadd.f32 0.0, %v93
    %v95 = vpop.f32.mrf.mxu0
    %v96 = vadd.f32 0.0, %v95
    %97 = vdwg.mxu0
    %v98 = vadd.f32 %v55, %v94
    %v99 = vadd.f32 %v56, %v96
    %100 = vst.msk [vmem:[#allocation2] sm:$0xff] %vm80, %v98
    %101 = vst.msk [vmem:[#allocation2 + $0x8] sm:$0xff] %vm80, %v99
    // Predicated region
    $region26: #{tpu_custom_call.1} parent=1 // pred_check
      %p102 = pneg %p48
    $region27: #{tpu_custom_call.1} parent=1 // pred_check_branch
      %104 = sbr.rel (%p102) target = $region29
    $region28: #{tpu_custom_call.1} parent=1 // pred_region
      %v105 = vld [vmem:[#allocation2] sm:$0xff]
      %v106 = vld [vmem:[#allocation2 + $0x8] sm:$0xff]
      %v107 = vld [vmem:[%s2] sm:$0x1]
      %v109 = vperm.slane %v107, 0
      %v111 = vadd.f32 %v105, %v109
      %v112 = vadd.f32 %v106, %v109
      %v113 = vpack.c.bf16 %v111, %v111
      %v114 = vpack.c.bf16 %v112, %v112
      %vm115 = vcmask 257024
      %116 = vst.msk [vmem:[#allocation8] sm:$0xf] %vm115, %v113
      %117 = vst.msk [vmem:[#allocation8 + $0x4] sm:$0xf] %vm115, %v114
    $region29: #{tpu_custom_call.1} parent=1 // pred_fallthru
      _
    // Predicated region
    $region30: #{tpu_custom_call.1} parent=1 // pred_check
      _
    $region31: #{tpu_custom_call.1} parent=1 // pred_check_branch
      %119 = sbr.rel (0) target = $region33
    $region32: #{tpu_custom_call.1} parent=1 // pred_region
      %121 = vsyncadd [#allocation5], 0
      %s122 = sshll.u32 [#allocation8], 4
      %s123 = int_to_ptr.vmem [resolvable:$true] %s122
      %s124 = sshll.u32 %s3, 4
      %s125 = int_to_ptr.hbm [resolvable:$true] %s124
      %130 = dma.vmem_to_hbm [thread:$0]  %s123, 128, %s125, [#allocation5], 64, 64, 4
    $region33: #{tpu_custom_call.1} parent=1 // pred_fallthru
      _
    // Predicated region
    $region34: #{tpu_custom_call.1} parent=1 // pred_check
      _
    $region35: #{tpu_custom_call.1} parent=1 // pred_check_branch
      %132 = sbr.rel (0) target = $region37
    $region36: #{tpu_custom_call.1} parent=1 // pred_region
      %134 = dma.done [#allocation5], 128
    $region37: #{tpu_custom_call.1} parent=1 // pred_fallthru
      _
    %135 = vsyncpa [#allocation4], 1
    %136 = vsyncpa [#allocation7], 1
    %137 = vsyncpa [#allocation5], 1

</llo_original>
